<compile_context>
chip_gen: v7x
topology: tpu7x:2x2x1
jax: 0.10.0
libtpu: 0.0.40
codegen_flags: <defaults>
</compile_context>

<pallas_src>
import functools

import jax
import jax.numpy as jnp
from jax import lax
from jax.experimental import pallas as pl
from jax.experimental.pallas import tpu as pltpu


def _round_up(n, m):
    return ((n + m - 1) // m) * m


def dqn_kernel(x_ref, w1_ref, b1_ref, w2_ref, b2_ref, w3_ref, b3_ref, o_ref,
               *, sub):
    """One grid step.

    x_ref: (tile, d_in) slab of the batch (natural layout, batch on sublanes).
    o_ref: matching lane-dense (1, tile) output slab.
    The tile is processed in `sub`-lane chunks to bound vreg pressure.
    """
    w1 = w1_ref[...]                      # (H1, d_in)
    w2 = w2_ref[...]                      # (H2, H1)
    w3 = w3_ref[...]                      # (1,  H2)
    b3 = b3_ref[0, 0]                     # scalar (SMEM)

    tile = x_ref.shape[0]
    n_sub = tile // sub

    # Hoist bias lane-broadcasts out of the sub-chunk loop (JAX does not CSE
    # broadcast_in_dim; per-iteration broadcasts would be repeated).
    b1 = jnp.broadcast_to(b1_ref[...], (w1.shape[0], sub))   # (H1, sub)
    b2 = jnp.broadcast_to(b2_ref[...], (w2.shape[0], sub))   # (H2, sub)

    # Contract d_in of both operands: w1 (H1, d_in) . xc (sub, d_in)^T.
    # Batch lands on the lane axis of the result -> lane-dense from here on.
    dnums = (((1,), (1,)), ((), ()))

    def body(c, carry):
        off = pl.multiple_of(c * sub, sub)
        xc = x_ref[pl.ds(off, sub), :]                            # (sub, d_in)
        h1 = lax.dot_general(w1, xc, dnums,
                             preferred_element_type=jnp.float32)  # (H1, sub)
        h1 = jnp.maximum(h1 + b1, 0.0)
        h2 = jnp.dot(w2, h1, preferred_element_type=jnp.float32)  # (H2, sub)
        h2 = jnp.maximum(h2 + b2, 0.0)
        out = jnp.dot(w3, h2, preferred_element_type=jnp.float32) # (1, sub)
        o_ref[:, pl.ds(off, sub)] = (out + b3).astype(o_ref.dtype)
        return carry

    lax.fori_loop(0, n_sub, body, 0, unroll=True)


def dqn_forward(x, params, *, tile_b=2048, sub=512):
    """x: (B, d_state + d_action) float32.  Returns (B, 1) float32."""
    w1, b1, w2, b2, w3, b3 = params
    B, d_in = x.shape
    if B == 0:
        return jnp.zeros((0, 1), x.dtype)

    # Sub-chunk: multiple of 128 lanes (512 keeps h1/h2 at 16 vregs each).
    sub = _round_up(max(128, min(sub, tile_b)), 128)
    tile_b = _round_up(tile_b, sub)

    # Batch tile: multiple of `sub`, as large as useful (amortises per-step
    # overhead), capped near B/2 for large batches so v7x's two TensorCores
    # both receive grid steps via the "parallel" axis.
    tile = min(tile_b, _round_up(B, sub))
    if B >= 2 * sub:
        tile = min(tile, _round_up(pl.cdiv(B, 2), sub))
    tile = max(tile, sub)

    grid = (pl.cdiv(B, tile),)
    full = lambda i: (0, 0)   # weights/biases: single block, VMEM-resident

    out = pl.pallas_call(
        functools.partial(dqn_kernel, sub=sub),
        out_shape=jax.ShapeDtypeStruct((1, B), jnp.float32),
        grid=grid,
        in_specs=[
            pl.BlockSpec((tile, d_in), lambda i: (i, 0)),        # x (pipelined)
            pl.BlockSpec(w1.shape, full),                        # (32, d_in)
            pl.BlockSpec(b1.shape, full),                        # (32, 1)
            pl.BlockSpec(w2.shape, full),                        # (32, 32)
            pl.BlockSpec(b2.shape, full),                        # (32, 1)
            pl.BlockSpec(w3.shape, full),                        # (1, 32)
            pl.BlockSpec(memory_space=pltpu.MemorySpace.SMEM),   # b3 scalar
        ],
        out_specs=pl.BlockSpec((1, tile), lambda i: (0, i)),     # lane-dense slab
        compiler_params=pltpu.CompilerParams(
            dimension_semantics=("parallel",)),
    )(x, w1, b1, w2, b2, w3, b3)

    return out.reshape(B, 1)


def init_dqn_params(key, d_state=4, d_action=4, hidden=32):
    """PyTorch-default-style Linear init (uniform(+/-1/sqrt(fan_in))).
    Weights stored (out, in), biases (out, 1) to match the W @ x dataflow."""
    d_in = d_state + d_action
    dims = [(d_in, hidden), (hidden, hidden), (hidden, 1)]
    params = []
    for (fan_in, fan_out) in dims:
        key, kw, kb = jax.random.split(key, 3)
        bound = 1.0 / jnp.sqrt(jnp.float32(fan_in))
        w = jax.random.uniform(kw, (fan_out, fan_in), jnp.float32, -bound, bound)
        b = jax.random.uniform(kb, (fan_out, 1), jnp.float32, -bound, bound)
        params += [w, b]
    return tuple(params)


def dqn_reference(x, params):
    """Plain-JAX reference of the same forward pass (PyTorch semantics)."""
    w1, b1, w2, b2, w3, b3 = params
    h1 = jnp.maximum(x @ w1.T + b1.T, 0.0)
    h2 = jnp.maximum(h1 @ w2.T + b2.T, 0.0)
    return h2 @ w3.T + b3.T


if __name__ == "__main__":
    key = jax.random.PRNGKey(0)
    key, kx1, kx2, kx3 = jax.random.split(key, 4)

    d_state, d_action = 4, 4
    params = init_dqn_params(key, d_state=d_state, d_action=d_action)

    # Small batch: single (padded) grid step, ragged inside the block.
    x = jax.random.normal(kx1, (8, d_state + d_action), jnp.float32)
    out = jax.block_until_ready(dqn_forward(x, params))
    ref = dqn_reference(x, params)
    assert out.shape == (8, 1), out.shape
    assert jnp.allclose(out, ref, atol=1e-5, rtol=1e-5)

    # Larger batch: 2 grid steps (v7x dual-TC split), ragged last block.
    x2 = jax.random.normal(kx2, (1200, d_state + d_action), jnp.float32)
    out2 = jax.block_until_ready(dqn_forward(x2, params))
    ref2 = dqn_reference(x2, params)
    assert out2.shape == (1200, 1), out2.shape
    assert jnp.allclose(out2, ref2, atol=1e-5, rtol=1e-5)

    # Smaller sub-chunk exercises a longer unrolled inner loop + ragged tile.
    x3 = jax.random.normal(kx3, (300, d_state + d_action), jnp.float32)
    out3 = jax.block_until_ready(dqn_forward(x3, params, tile_b=1024, sub=128))
    ref3 = dqn_reference(x3, params)
    assert out3.shape == (300, 1), out3.shape
    assert jnp.allclose(out3, ref3, atol=1e-5, rtol=1e-5)

    print("KERNEL_OK")
</pallas_src>

<mosaic_0001>
module attributes {stable_mosaic.version = 11 : i64} {
  func.func @dqn_kernel(%arg0: i32, %arg1: memref<512x8xf32, #tpu.memory_space<vmem>>, %arg2: memref<32x8xf32, #tpu.memory_space<vmem>>, %arg3: memref<32x1xf32, #tpu.memory_space<vmem>>, %arg4: memref<32x32xf32, #tpu.memory_space<vmem>>, %arg5: memref<32x1xf32, #tpu.memory_space<vmem>>, %arg6: memref<1x32xf32, #tpu.memory_space<vmem>>, %arg7: memref<1x1xf32, #tpu.memory_space<smem>>, %arg8: memref<1x512xf32, #tpu.memory_space<vmem>>) attributes {dimension_semantics = [#tpu.dimension_semantics<parallel>], iteration_bounds = array<i64: 1>, scalar_prefetch = 0 : i64, scratch_operands = 0 : i64, tpu.core_type = #tpu.core_type<tc>, window_params = [{transform_indices = @transform_0, window_bounds = array<i64: 512, 8>}, {pipeline_mode = #tpu.pipeline_mode<synchronous>, transform_indices = @transform_1, window_bounds = array<i64: 32, 8>}, {pipeline_mode = #tpu.pipeline_mode<synchronous>, transform_indices = @transform_2, window_bounds = array<i64: 32, 1>}, {pipeline_mode = #tpu.pipeline_mode<synchronous>, transform_indices = @transform_3, window_bounds = array<i64: 32, 32>}, {pipeline_mode = #tpu.pipeline_mode<synchronous>, transform_indices = @transform_4, window_bounds = array<i64: 32, 1>}, {pipeline_mode = #tpu.pipeline_mode<synchronous>, transform_indices = @transform_5, window_bounds = array<i64: 1, 32>}, {transform_indices = @transform_6, window_bounds = array<i64: 1, 1>}, {transform_indices = @transform_7, window_bounds = array<i64: 1, 512>}]} {
    %c0 = arith.constant 0 : index
    %c0_0 = arith.constant 0 : index
    %0 = vector.load %arg2[%c0, %c0_0] : memref<32x8xf32, #tpu.memory_space<vmem>>, vector<32x8xf32>
    %c0_1 = arith.constant 0 : index
    %c0_2 = arith.constant 0 : index
    %1 = vector.load %arg4[%c0_1, %c0_2] : memref<32x32xf32, #tpu.memory_space<vmem>>, vector<32x32xf32>
    %c0_3 = arith.constant 0 : index
    %c0_4 = arith.constant 0 : index
    %2 = vector.load %arg6[%c0_3, %c0_4] : memref<1x32xf32, #tpu.memory_space<vmem>>, vector<1x32xf32>
    %c0_5 = arith.constant 0 : index
    %c0_6 = arith.constant 0 : index
    %3 = memref.load %arg7[%c0_5, %c0_6] : memref<1x1xf32, #tpu.memory_space<smem>>
    %c0_7 = arith.constant 0 : index
    %c0_8 = arith.constant 0 : index
    %4 = vector.load %arg3[%c0_7, %c0_8] : memref<32x1xf32, #tpu.memory_space<vmem>>, vector<32x1xf32>
    %5 = vector.shape_cast %4 : vector<32x1xf32> to vector<32x1xf32>
    %6 = vector.broadcast %5 : vector<32x1xf32> to vector<32x512xf32>
    %c0_9 = arith.constant 0 : index
    %c0_10 = arith.constant 0 : index
    %7 = vector.load %arg5[%c0_9, %c0_10] : memref<32x1xf32, #tpu.memory_space<vmem>>, vector<32x1xf32>
    %8 = vector.shape_cast %7 : vector<32x1xf32> to vector<32x1xf32>
    %9 = vector.broadcast %8 : vector<32x1xf32> to vector<32x512xf32>
    %c0_i32 = arith.constant 0 : i32
    %c512_i32 = arith.constant 512 : i32
    %10 = arith.muli %c0_i32, %c512_i32 : i32
    %11 = tpu.assume_multiple %10, 512 : i32
    %12 = arith.index_cast %11 : i32 to index
    %c0_11 = arith.constant 0 : index
    %13 = vector.load %arg1[%12, %c0_11] : memref<512x8xf32, #tpu.memory_space<vmem>>, vector<512x8xf32>
    %cst = arith.constant dense<0.000000e+00> : vector<32x512xf32>
    %14 = tpu.matmul %0, %13, %cst {dimension_numbers = #tpu.dot_dimension_numbers<[1], [1], [0], [0], [0, 0, 1, 0], [], []>} : vector<32x8xf32>, vector<512x8xf32>, vector<32x512xf32> -> vector<32x512xf32>
    %15 = arith.addf %14, %6 : vector<32x512xf32>
    %cst_12 = arith.constant 0.000000e+00 : f32
    %16 = vector.broadcast %cst_12 : f32 to vector<32x512xf32>
    %17 = arith.maximumf %15, %16 : vector<32x512xf32>
    %cst_13 = arith.constant dense<0.000000e+00> : vector<32x512xf32>
    %18 = tpu.matmul %1, %17, %cst_13 {dimension_numbers = #tpu.dot_dimension_numbers<[1], [0], [0], [1], [0, 0, 1, 1], [], []>} : vector<32x32xf32>, vector<32x512xf32>, vector<32x512xf32> -> vector<32x512xf32>
    %19 = arith.addf %18, %9 : vector<32x512xf32>
    %cst_14 = arith.constant 0.000000e+00 : f32
    %20 = vector.broadcast %cst_14 : f32 to vector<32x512xf32>
    %21 = arith.maximumf %19, %20 : vector<32x512xf32>
    %cst_15 = arith.constant dense<0.000000e+00> : vector<1x512xf32>
    %22 = tpu.matmul %2, %21, %cst_15 {dimension_numbers = #tpu.dot_dimension_numbers<[1], [0], [0], [1], [0, 0, 1, 1], [], []>} : vector<1x32xf32>, vector<32x512xf32>, vector<1x512xf32> -> vector<1x512xf32>
    %23 = vector.broadcast %3 : f32 to vector<1x512xf32>
    %24 = arith.addf %22, %23 : vector<1x512xf32>
    %c0_16 = arith.constant 0 : index
    %25 = arith.index_cast %11 : i32 to index
    %26 = vector.load %arg8[%c0_16, %25] : memref<1x512xf32, #tpu.memory_space<vmem>>, vector<1x512xf32>
    tpu.vector_store %arg8[%c0_16, %25], %24 {strides = array<i32>} : memref<1x512xf32, #tpu.memory_space<vmem>>, vector<1x512xf32>,
    %c1_i32 = arith.constant 1 : i32
    return
  }
  func.func @transform_0(%arg0: i32) -> (i32, i32) {
    %c0_i32 = arith.constant 0 : i32
    %c0_i32_0 = arith.constant 0 : i32
    return %arg0, %c0_i32 : i32, i32
  }
  func.func @transform_1(%arg0: i32) -> (i32, i32) {
    %c0_i32 = arith.constant 0 : i32
    %c0_i32_0 = arith.constant 0 : i32
    %c0_i32_1 = arith.constant 0 : i32
    return %c0_i32, %c0_i32_0 : i32, i32
  }
  func.func @transform_2(%arg0: i32) -> (i32, i32) {
    %c0_i32 = arith.constant 0 : i32
    %c0_i32_0 = arith.constant 0 : i32
    %c0_i32_1 = arith.constant 0 : i32
    return %c0_i32, %c0_i32_0 : i32, i32
  }
  func.func @transform_3(%arg0: i32) -> (i32, i32) {
    %c0_i32 = arith.constant 0 : i32
    %c0_i32_0 = arith.constant 0 : i32
    %c0_i32_1 = arith.constant 0 : i32
    return %c0_i32, %c0_i32_0 : i32, i32
  }
  func.func @transform_4(%arg0: i32) -> (i32, i32) {
    %c0_i32 = arith.constant 0 : i32
    %c0_i32_0 = arith.constant 0 : i32
    %c0_i32_1 = arith.constant 0 : i32
    return %c0_i32, %c0_i32_0 : i32, i32
  }
  func.func @transform_5(%arg0: i32) -> (i32, i32) {
    %c0_i32 = arith.constant 0 : i32
    %c0_i32_0 = arith.constant 0 : i32
    %c0_i32_1 = arith.constant 0 : i32
    return %c0_i32, %c0_i32_0 : i32, i32
  }
  func.func @transform_6(%arg0: i32) -> (i32, i32) {
    %c0_i32 = arith.constant 0 : i32
    %c0_i32_0 = arith.constant 0 : i32
    %c0_i32_1 = arith.constant 0 : i32
    return %c0_i32, %c0_i32_0 : i32, i32
  }
  func.func @transform_7(%arg0: i32) -> (i32, i32) {
    %c0_i32 = arith.constant 0 : i32
    %c0_i32_0 = arith.constant 0 : i32
    return %c0_i32, %arg0 : i32, i32
  }
}

</mosaic_0001>

<llo_original>
// kernel: tpu_custom_call.1
$region0: #{tpu_custom_call.1}
  #allocation0 [shape = 'u32[]', space=smem, size = 0x4, offset = 0x4, fixed_abs, tag = 'smem constant byte address 0x4 - core index']
  #allocation1 [shape = 'u32[144,128]{1,0:T(1,128)}', space=vmem, size = 0x12000, scoped, tag = 'internal scratch']
  #allocation2 [shape = 'f32[1,1]{1,0:T(1,128)S(6)}', space=smem, size = 0x200, scoped, tag = 'scoped memory for tpu_custom_call.1']
  %s0 = inlined_call_operand.vmem [shape: f32[8,8], index: 0, kind: input, shape index: {}]
  %s1 = inlined_call_operand.vmem [shape: f32[32,8], index: 1, kind: input, shape index: {}]
  %s2 = inlined_call_operand.vmem [shape: f32[32,1], index: 2, kind: input, shape index: {}]
  %s3 = inlined_call_operand.vmem [shape: f32[32,32], index: 3, kind: input, shape index: {}]
  %s4 = inlined_call_operand.vmem [shape: f32[32,1], index: 4, kind: input, shape index: {}]
  %s5 = inlined_call_operand.vmem [shape: f32[1,32], index: 5, kind: input, shape index: {}]
  %s6 = inlined_call_operand.<no memory space> [shape: f32[1,1], index: 6, kind: input, shape index: {}]
  %s7 = inlined_call_operand.hbm [shape: f32[1,8], index: 7, kind: output, shape index: {}]
  %s8 = sld [smem:[#allocation0]]
  $region38: #{tpu_custom_call.1} parent=0
    _
  %s10 = ssub.s32 1, %s8
  %s11 = scalar_select 0, %s10, %s8
  %12 = sst [smem:[#allocation2]] %s6
  $region1: #{tpu_custom_call.1} parent=0
    #allocation3 [shape = 'u8[2048]{0}', space=vmem, size = 0x800, scoped, tag = 'output window, operand 0, single buffered']
    #allocation4 [shape = 's32[1]{0}', space=sflag, size = 0x4, scoped, tag = 'scoped memory for tpu_custom_call.1']
    %13 = vsyncpa [#allocation4], 0
    // Predicated region
    $region2: #{tpu_custom_call.1} parent=1 // pred_check
      _
    $region3: #{tpu_custom_call.1} parent=1 // pred_check_branch
      %15 = sbr.rel (0) target = $region5
    $region4: #{tpu_custom_call.1} parent=1 // pred_region
      _
    $region5: #{tpu_custom_call.1} parent=1 // pred_fallthru
      _
    // Predicated region
    $region6: #{tpu_custom_call.1} parent=1 // pred_check
      _
    $region7: #{tpu_custom_call.1} parent=1 // pred_check_branch
      %17 = sbr.rel (0) target = $region9
    $region8: #{tpu_custom_call.1} parent=1 // pred_region
      _
    $region9: #{tpu_custom_call.1} parent=1 // pred_fallthru
      _
    // Predicated region
    $region10: #{tpu_custom_call.1} parent=1 // pred_check
      _
    $region11: #{tpu_custom_call.1} parent=1 // pred_check_branch
      %19 = sbr.rel (0) target = $region13
    $region12: #{tpu_custom_call.1} parent=1 // pred_region
      _
    $region13: #{tpu_custom_call.1} parent=1 // pred_fallthru
      _
    // Predicated region
    $region14: #{tpu_custom_call.1} parent=1 // pred_check
      _
    $region15: #{tpu_custom_call.1} parent=1 // pred_check_branch
      %21 = sbr.rel (0) target = $region17
    $region16: #{tpu_custom_call.1} parent=1 // pred_region
      _
    $region17: #{tpu_custom_call.1} parent=1 // pred_fallthru
      _
    // Predicated region
    $region18: #{tpu_custom_call.1} parent=1 // pred_check
      _
    $region19: #{tpu_custom_call.1} parent=1 // pred_check_branch
      %23 = sbr.rel (0) target = $region21
    $region20: #{tpu_custom_call.1} parent=1 // pred_region
      _
    $region21: #{tpu_custom_call.1} parent=1 // pred_fallthru
      _
    // Predicated region
    $region22: #{tpu_custom_call.1} parent=1 // pred_check
      _
    $region23: #{tpu_custom_call.1} parent=1 // pred_check_branch
      %25 = sbr.rel (0) target = $region25
    $region24: #{tpu_custom_call.1} parent=1 // pred_region
      _
    $region25: #{tpu_custom_call.1} parent=1 // pred_fallthru
      _
    // Predicated region
    $region26: #{tpu_custom_call.1} parent=1 // pred_check
      _
    $region27: #{tpu_custom_call.1} parent=1 // pred_check_branch
      %27 = sbr.rel (0) target = $region29
    $region28: #{tpu_custom_call.1} parent=1 // pred_region
      _
    $region29: #{tpu_custom_call.1} parent=1 // pred_fallthru
      _
    %v28 = vld [vmem:[%s1] sm:$0xff]
    %v29 = vld [vmem:[%s1 + $0x8] sm:$0xff]
    %v30 = vld [vmem:[%s1 + $0x10] sm:$0xff]
    %v31 = vld [vmem:[%s1 + $0x18] sm:$0xff]
    %v32 = vld [vmem:[%s3] sm:$0xff]
    %v33 = vld [vmem:[%s3 + $0x8] sm:$0xff]
    %v34 = vld [vmem:[%s3 + $0x10] sm:$0xff]
    %v35 = vld [vmem:[%s3 + $0x18] sm:$0xff]
    %v36 = vld [vmem:[%s5] sm:$0x1]
    %s37 = sld [smem:[#allocation2]]
    %v38 = vld [vmem:[%s2] sm:$0xff]
    %v39 = vld [vmem:[%s2 + $0x8] sm:$0xff]
    %v40 = vld [vmem:[%s2 + $0x10] sm:$0xff]
    %v41 = vld [vmem:[%s2 + $0x18] sm:$0xff]
    %43 = vset.pattern.permute.xlu0 0
    %44 = vperm.xlu0 %43, %v38
    %v45 = vpop.permute.xlu0 %44
    %48 = vset.pattern.permute.xlu0 0
    %49 = vperm.xlu0 %48, %v39
    %v50 = vpop.permute.xlu0 %49
    %53 = vset.pattern.permute.xlu0 0
    %54 = vperm.xlu0 %53, %v40
    %v55 = vpop.permute.xlu0 %54
    %58 = vset.pattern.permute.xlu0 0
    %59 = vperm.xlu0 %58, %v41
    %v60 = vpop.permute.xlu0 %59
    %v62 = vld [vmem:[%s4] sm:$0xff]
    %v63 = vld [vmem:[%s4 + $0x8] sm:$0xff]
    %v64 = vld [vmem:[%s4 + $0x10] sm:$0xff]
    %v65 = vld [vmem:[%s4 + $0x18] sm:$0xff]
    %67 = vset.pattern.permute.xlu0 0
    %68 = vperm.xlu0 %67, %v62
    %v69 = vpop.permute.xlu0 %68
    %72 = vset.pattern.permute.xlu0 0
    %73 = vperm.xlu0 %72, %v63
    %v74 = vpop.permute.xlu0 %73
    %77 = vset.pattern.permute.xlu0 0
    %78 = vperm.xlu0 %77, %v64
    %v79 = vpop.permute.xlu0 %78
    %82 = vset.pattern.permute.xlu0 0
    %83 = vperm.xlu0 %82, %v65
    %v84 = vpop.permute.xlu0 %83
    %v86 = vld [vmem:[%s0] sm:$0xff]
    %v87 = vld [vmem:[%s0 + $0x8] sm:$0xff]
    %v88 = vld [vmem:[%s0 + $0x10] sm:$0xff]
    %v89 = vld [vmem:[%s0 + $0x18] sm:$0xff]
    %v90 = vld [vmem:[%s0 + $0x20] sm:$0xff]
    %v91 = vld [vmem:[%s0 + $0x28] sm:$0xff]
    %v92 = vld [vmem:[%s0 + $0x30] sm:$0xff]
    %v93 = vld [vmem:[%s0 + $0x38] sm:$0xff]
    %v94 = vld [vmem:[%s0 + $0x40] sm:$0xff]
    %v95 = vld [vmem:[%s0 + $0x48] sm:$0xff]
    %v96 = vld [vmem:[%s0 + $0x50] sm:$0xff]
    %v97 = vld [vmem:[%s0 + $0x58] sm:$0xff]
    %v98 = vld [vmem:[%s0 + $0x60] sm:$0xff]
    %v99 = vld [vmem:[%s0 + $0x68] sm:$0xff]
    %v100 = vld [vmem:[%s0 + $0x70] sm:$0xff]
    %v101 = vld [vmem:[%s0 + $0x78] sm:$0xff]
    %v102 = vld [vmem:[%s0 + $0x80] sm:$0xff]
    %v103 = vld [vmem:[%s0 + $0x88] sm:$0xff]
    %v104 = vld [vmem:[%s0 + $0x90] sm:$0xff]
    %v105 = vld [vmem:[%s0 + $0x98] sm:$0xff]
    %v106 = vld [vmem:[%s0 + $0xa0] sm:$0xff]
    %v107 = vld [vmem:[%s0 + $0xa8] sm:$0xff]
    %v108 = vld [vmem:[%s0 + $0xb0] sm:$0xff]
    %v109 = vld [vmem:[%s0 + $0xb8] sm:$0xff]
    %v110 = vld [vmem:[%s0 + $0xc0] sm:$0xff]
    %v111 = vld [vmem:[%s0 + $0xc8] sm:$0xff]
    %v112 = vld [vmem:[%s0 + $0xd0] sm:$0xff]
    %v113 = vld [vmem:[%s0 + $0xd8] sm:$0xff]
    %v114 = vld [vmem:[%s0 + $0xe0] sm:$0xff]
    %v115 = vld [vmem:[%s0 + $0xe8] sm:$0xff]
    %v116 = vld [vmem:[%s0 + $0xf0] sm:$0xff]
    %v117 = vld [vmem:[%s0 + $0xf8] sm:$0xff]
    %v118 = vld [vmem:[%s0 + $0x100] sm:$0xff]
    %v119 = vld [vmem:[%s0 + $0x108] sm:$0xff]
    %v120 = vld [vmem:[%s0 + $0x110] sm:$0xff]
    %v121 = vld [vmem:[%s0 + $0x118] sm:$0xff]
    %v122 = vld [vmem:[%s0 + $0x120] sm:$0xff]
    %v123 = vld [vmem:[%s0 + $0x128] sm:$0xff]
    %v124 = vld [vmem:[%s0 + $0x130] sm:$0xff]
    %v125 = vld [vmem:[%s0 + $0x138] sm:$0xff]
    %v126 = vld [vmem:[%s0 + $0x140] sm:$0xff]
    %v127 = vld [vmem:[%s0 + $0x148] sm:$0xff]
    %v128 = vld [vmem:[%s0 + $0x150] sm:$0xff]
    %v129 = vld [vmem:[%s0 + $0x158] sm:$0xff]
    %v130 = vld [vmem:[%s0 + $0x160] sm:$0xff]
    %v131 = vld [vmem:[%s0 + $0x168] sm:$0xff]
    %v132 = vld [vmem:[%s0 + $0x170] sm:$0xff]
    %v133 = vld [vmem:[%s0 + $0x178] sm:$0xff]
    %v134 = vld [vmem:[%s0 + $0x180] sm:$0xff]
    %v135 = vld [vmem:[%s0 + $0x188] sm:$0xff]
    %v136 = vld [vmem:[%s0 + $0x190] sm:$0xff]
    %v137 = vld [vmem:[%s0 + $0x198] sm:$0xff]
    %v138 = vld [vmem:[%s0 + $0x1a0] sm:$0xff]
    %v139 = vld [vmem:[%s0 + $0x1a8] sm:$0xff]
    %v140 = vld [vmem:[%s0 + $0x1b0] sm:$0xff]
    %v141 = vld [vmem:[%s0 + $0x1b8] sm:$0xff]
    %v142 = vld [vmem:[%s0 + $0x1c0] sm:$0xff]
    %v143 = vld [vmem:[%s0 + $0x1c8] sm:$0xff]
    %v144 = vld [vmem:[%s0 + $0x1d0] sm:$0xff]
    %v145 = vld [vmem:[%s0 + $0x1d8] sm:$0xff]
    %v146 = vld [vmem:[%s0 + $0x1e0] sm:$0xff]
    %v147 = vld [vmem:[%s0 + $0x1e8] sm:$0xff]
    %v148 = vld [vmem:[%s0 + $0x1f0] sm:$0xff]
    %v149 = vld [vmem:[%s0 + $0x1f8] sm:$0xff]
    %vm150 = vcmask 64512
    %v152 = vsel %vm150, %v28, 0
    %v155 = vsel %vm150, %v29, 0
    %v158 = vsel %vm150, %v30, 0
    %v161 = vsel %vm150, %v31, 0
    %v164 = vsel %vm150, %v86, 0
    %v167 = vsel %vm150, %v87, 0
    %v170 = vsel %vm150, %v88, 0
    %v173 = vsel %vm150, %v89, 0
    %v176 = vsel %vm150, %v90, 0
    %v179 = vsel %vm150, %v91, 0
    %v182 = vsel %vm150, %v92, 0
    %v185 = vsel %vm150, %v93, 0
    %v188 = vsel %vm150, %v94, 0
    %v191 = vsel %vm150, %v95, 0
    %v194 = vsel %vm150, %v96, 0
    %v197 = vsel %vm150, %v97, 0
    %v200 = vsel %vm150, %v98, 0
    %v203 = vsel %vm150, %v99, 0
    %v206 = vsel %vm150, %v100, 0
    %v209 = vsel %vm150, %v101, 0
    %v212 = vsel %vm150, %v102, 0
    %v215 = vsel %vm150, %v103, 0
    %v218 = vsel %vm150, %v104, 0
    %v221 = vsel %vm150, %v105, 0
    %v224 = vsel %vm150, %v106, 0
    %v227 = vsel %vm150, %v107, 0
    %v230 = vsel %vm150, %v108, 0
    %v233 = vsel %vm150, %v109, 0
    %v236 = vsel %vm150, %v110, 0
    %v239 = vsel %vm150, %v111, 0
    %v242 = vsel %vm150, %v112, 0
    %v245 = vsel %vm150, %v113, 0
    %v248 = vsel %vm150, %v114, 0
    %v251 = vsel %vm150, %v115, 0
    %v254 = vsel %vm150, %v116, 0
    %v257 = vsel %vm150, %v117, 0
    %v260 = vsel %vm150, %v118, 0
    %v263 = vsel %vm150, %v119, 0
    %v266 = vsel %vm150, %v120, 0
    %v269 = vsel %vm150, %v121, 0
    %v272 = vsel %vm150, %v122, 0
    %v275 = vsel %vm150, %v123, 0
    %v278 = vsel %vm150, %v124, 0
    %v281 = vsel %vm150, %v125, 0
    %v284 = vsel %vm150, %v126, 0
    %v287 = vsel %vm150, %v127, 0
    %v290 = vsel %vm150, %v128, 0
    %v293 = vsel %vm150, %v129, 0
    %v296 = vsel %vm150, %v130, 0
    %v299 = vsel %vm150, %v131, 0
    %v302 = vsel %vm150, %v132, 0
    %v305 = vsel %vm150, %v133, 0
    %v308 = vsel %vm150, %v134, 0
    %v311 = vsel %vm150, %v135, 0
    %v314 = vsel %vm150, %v136, 0
    %v317 = vsel %vm150, %v137, 0
    %v320 = vsel %vm150, %v138, 0
    %v323 = vsel %vm150, %v139, 0
    %v326 = vsel %vm150, %v140, 0
    %v329 = vsel %vm150, %v141, 0
    %v332 = vsel %vm150, %v142, 0
    %v335 = vsel %vm150, %v143, 0
    %v338 = vsel %vm150, %v144, 0
    %v341 = vsel %vm150, %v145, 0
    %v344 = vsel %vm150, %v146, 0
    %v347 = vsel %vm150, %v147, 0
    %v350 = vsel %vm150, %v148, 0
    %v353 = vsel %vm150, %v149, 0
    %355 = vmatprep.subr.mxu0 0.0
    %356 = vmatpush1.xpose.msra.mxu0 %v164
    %357 = vmatprep.subr.mxu0 0.0
    %358 = vmatpush1.xpose.msra.mxu0 %v167
    %359 = vmatprep.subr.mxu0 0.0
    %360 = vmatpush1.xpose.msra.mxu0 %v170
    %361 = vmatprep.subr.mxu0 0.0
    %362 = vmatpush1.xpose.msra.mxu0 %v173
    %363 = vmatprep.subr.mxu0 0.0
    %364 = vmatpush1.xpose.msra.mxu0 %v176
    %365 = vmatprep.subr.mxu0 0.0
    %366 = vmatpush1.xpose.msra.mxu0 %v179
    %367 = vmatprep.subr.mxu0 0.0
    %368 = vmatpush1.xpose.msra.mxu0 %v182
    %369 = vmatprep.subr.mxu0 0.0
    %370 = vmatpush1.xpose.msra.mxu0 %v185
    %371 = vmatprep.subr.mxu0 0.0
    %372 = vmatpush1.xpose.msra.mxu0 %v188
    %373 = vmatprep.subr.mxu0 0.0
    %374 = vmatpush1.xpose.msra.mxu0 %v191
    %375 = vmatprep.subr.mxu0 0.0
    %376 = vmatpush1.xpose.msra.mxu0 %v194
    %377 = vmatprep.subr.mxu0 0.0
    %378 = vmatpush1.xpose.msra.mxu0 %v197
    %379 = vmatprep.subr.mxu0 0.0
    %380 = vmatpush1.xpose.msra.mxu0 %v200
    %381 = vmatprep.subr.mxu0 0.0
    %382 = vmatpush1.xpose.msra.mxu0 %v203
    %383 = vmatprep.subr.mxu0 0.0
    %384 = vmatpush1.xpose.msra.mxu0 %v206
    %385 = vmatprep.subr.mxu0 0.0
    %386 = vmatpush1.xpose.msra.mxu0 %v209
    %387 = vmatprep.subr.mxu0 0.0
    %388 = vmatpush1.xpose.msra.mxu0 %v212
    %389 = vmatprep.subr.mxu0 0.0
    %390 = vmatpush1.xpose.msra.mxu0 %v215
    %391 = vmatprep.subr.mxu0 0.0
    %392 = vmatpush1.xpose.msra.mxu0 %v218
    %393 = vmatprep.subr.mxu0 0.0
    %394 = vmatpush1.xpose.msra.mxu0 %v221
    %395 = vmatprep.subr.mxu0 0.0
    %396 = vmatpush1.xpose.msra.mxu0 %v224
    %397 = vmatprep.subr.mxu0 0.0
    %398 = vmatpush1.xpose.msra.mxu0 %v227
    %399 = vmatprep.subr.mxu0 0.0
    %400 = vmatpush1.xpose.msra.mxu0 %v230
    %401 = vmatprep.subr.mxu0 0.0
    %402 = vmatpush1.xpose.msra.mxu0 %v233
    %403 = vmatprep.subr.mxu0 0.0
    %404 = vmatpush1.xpose.msra.mxu0 %v236
    %405 = vmatprep.subr.mxu0 0.0
    %406 = vmatpush1.xpose.msra.mxu0 %v239
    %407 = vmatprep.subr.mxu0 0.0
    %408 = vmatpush1.xpose.msra.mxu0 %v242
    %409 = vmatprep.subr.mxu0 0.0
    %410 = vmatpush1.xpose.msra.mxu0 %v245
    %411 = vmatprep.subr.mxu0 0.0
    %412 = vmatpush1.xpose.msra.mxu0 %v248
    %413 = vmatprep.subr.mxu0 0.0
    %414 = vmatpush1.xpose.msra.mxu0 %v251
    %415 = vmatprep.subr.mxu0 0.0
    %416 = vmatpush1.xpose.msra.mxu0 %v254
    %417 = vmatprep.subr.mxu0 0.0
    %418 = vmatpush1.xpose.msra.mxu0 %v257
    %419 = vmatprep.mubr.f32.mxu0 0.0
    %420 = vmatmul.mubr.f32.gmra.mrb[0].mxu0 %v152
    %v421 = vpop.f32.mrb[0].mxu0
    %v422 = vadd.f32 %v45, %v421
    %v423 = vpop.f32.mrb[0].mxu0
    %v424 = vadd.f32 %v45, %v423
    %425 = vmatprep.mubr.f32.mxu0 0.0
    %426 = vmatmul.mubr.f32.gmra.mrb[0].mxu0 %v155
    %v427 = vpop.f32.mrb[0].mxu0
    %v428 = vadd.f32 %v50, %v427
    %v429 = vpop.f32.mrb[0].mxu0
    %v430 = vadd.f32 %v50, %v429
    %431 = vmatprep.mubr.f32.mxu0 0.0
    %432 = vmatmul.mubr.f32.gmra.mrb[0].mxu0 %v158
    %v433 = vpop.f32.mrb[0].mxu0
    %v434 = vadd.f32 %v55, %v433
    %v435 = vpop.f32.mrb[0].mxu0
    %v436 = vadd.f32 %v55, %v435
    %437 = vmatprep.mubr.f32.mxu0 0.0
    %438 = vmatmul.mubr.f32.gmra.mrb[0].mxu0 %v161
    %v439 = vpop.f32.mrb[0].mxu0
    %v440 = vadd.f32 %v60, %v439
    %v441 = vpop.f32.mrb[0].mxu0
    %v442 = vadd.f32 %v60, %v441
    %443 = vdwg.mxu0
    %444 = vmatprep.subr.mxu0 0.0
    %445 = vmatpush1.xpose.msra.mxu0 %v260
    %446 = vmatprep.subr.mxu0 0.0
    %447 = vmatpush1.xpose.msra.mxu0 %v263
    %448 = vmatprep.subr.mxu0 0.0
    %449 = vmatpush1.xpose.msra.mxu0 %v266
    %450 = vmatprep.subr.mxu0 0.0
    %451 = vmatpush1.xpose.msra.mxu0 %v269
    %452 = vmatprep.subr.mxu0 0.0
    %453 = vmatpush1.xpose.msra.mxu0 %v272
    %454 = vmatprep.subr.mxu0 0.0
    %455 = vmatpush1.xpose.msra.mxu0 %v275
    %456 = vmatprep.subr.mxu0 0.0
    %457 = vmatpush1.xpose.msra.mxu0 %v278
    %458 = vmatprep.subr.mxu0 0.0
    %459 = vmatpush1.xpose.msra.mxu0 %v281
    %460 = vmatprep.subr.mxu0 0.0
    %461 = vmatpush1.xpose.msra.mxu0 %v284
    %462 = vmatprep.subr.mxu0 0.0
    %463 = vmatpush1.xpose.msra.mxu0 %v287
    %464 = vmatprep.subr.mxu0 0.0
    %465 = vmatpush1.xpose.msra.mxu0 %v290
    %466 = vmatprep.subr.mxu0 0.0
    %467 = vmatpush1.xpose.msra.mxu0 %v293
    %468 = vmatprep.subr.mxu0 0.0
    %469 = vmatpush1.xpose.msra.mxu0 %v296
    %470 = vmatprep.subr.mxu0 0.0
    %471 = vmatpush1.xpose.msra.mxu0 %v299
    %472 = vmatprep.subr.mxu0 0.0
    %473 = vmatpush1.xpose.msra.mxu0 %v302
    %474 = vmatprep.subr.mxu0 0.0
    %475 = vmatpush1.xpose.msra.mxu0 %v305
    %476 = vmatprep.subr.mxu0 0.0
    %477 = vmatpush1.xpose.msra.mxu0 %v308
    %478 = vmatprep.subr.mxu0 0.0
    %479 = vmatpush1.xpose.msra.mxu0 %v311
    %480 = vmatprep.subr.mxu0 0.0
    %481 = vmatpush1.xpose.msra.mxu0 %v314
    %482 = vmatprep.subr.mxu0 0.0
    %483 = vmatpush1.xpose.msra.mxu0 %v317
    %484 = vmatprep.subr.mxu0 0.0
    %485 = vmatpush1.xpose.msra.mxu0 %v320
    %486 = vmatprep.subr.mxu0 0.0
    %487 = vmatpush1.xpose.msra.mxu0 %v323
    %488 = vmatprep.subr.mxu0 0.0
    %489 = vmatpush1.xpose.msra.mxu0 %v326
    %490 = vmatprep.subr.mxu0 0.0
    %491 = vmatpush1.xpose.msra.mxu0 %v329
    %492 = vmatprep.subr.mxu0 0.0
    %493 = vmatpush1.xpose.msra.mxu0 %v332
    %494 = vmatprep.subr.mxu0 0.0
    %495 = vmatpush1.xpose.msra.mxu0 %v335
    %496 = vmatprep.subr.mxu0 0.0
    %497 = vmatpush1.xpose.msra.mxu0 %v338
    %498 = vmatprep.subr.mxu0 0.0
    %499 = vmatpush1.xpose.msra.mxu0 %v341
    %500 = vmatprep.subr.mxu0 0.0
    %501 = vmatpush1.xpose.msra.mxu0 %v344
    %502 = vmatprep.subr.mxu0 0.0
    %503 = vmatpush1.xpose.msra.mxu0 %v347
    %504 = vmatprep.subr.mxu0 0.0
    %505 = vmatpush1.xpose.msra.mxu0 %v350
    %506 = vmatprep.subr.mxu0 0.0
    %507 = vmatpush1.xpose.msra.mxu0 %v353
    %508 = vmatprep.mubr.f32.mxu0 0.0
    %509 = vmatmul.mubr.f32.gmra.mrb[0].mxu0 %v152
    %v510 = vpop.f32.mrb[0].mxu0
    %v511 = vadd.f32 %v45, %v510
    %v512 = vpop.f32.mrb[0].mxu0
    %v513 = vadd.f32 %v45, %v512
    %514 = vmatprep.mubr.f32.mxu0 0.0
    %515 = vmatmul.mubr.f32.gmra.mrb[0].mxu0 %v155
    %v516 = vpop.f32.mrb[0].mxu0
    %v517 = vadd.f32 %v50, %v516
    %v518 = vpop.f32.mrb[0].mxu0
    %v519 = vadd.f32 %v50, %v518
    %520 = vmatprep.mubr.f32.mxu0 0.0
    %521 = vmatmul.mubr.f32.gmra.mrb[0].mxu0 %v158
    %v522 = vpop.f32.mrb[0].mxu0
    %v523 = vadd.f32 %v55, %v522
    %v524 = vpop.f32.mrb[0].mxu0
    %v525 = vadd.f32 %v55, %v524
    %526 = vmatprep.mubr.f32.mxu0 0.0
    %527 = vmatmul.mubr.f32.gmra.mrb[0].mxu0 %v161
    %v528 = vpop.f32.mrb[0].mxu0
    %v529 = vadd.f32 %v60, %v528
    %v530 = vpop.f32.mrb[0].mxu0
    %v531 = vadd.f32 %v60, %v530
    %532 = vdwg.mxu0
    %v533 = vmax.f32 %v422, 0.0
    %v534 = vmax.f32 %v424, 0.0
    %v535 = vmax.f32 %v511, 0.0
    %v536 = vmax.f32 %v513, 0.0
    %v537 = vmax.f32 %v428, 0.0
    %v538 = vmax.f32 %v430, 0.0
    %v539 = vmax.f32 %v517, 0.0
    %v540 = vmax.f32 %v519, 0.0
    %v541 = vmax.f32 %v434, 0.0
    %v542 = vmax.f32 %v436, 0.0
    %v543 = vmax.f32 %v523, 0.0
    %v544 = vmax.f32 %v525, 0.0
    %v545 = vmax.f32 %v440, 0.0
    %v546 = vmax.f32 %v442, 0.0
    %v547 = vmax.f32 %v529, 0.0
    %v548 = vmax.f32 %v531, 0.0
    %vm549 = vcmask 261120
    %v551 = vsel %vm549, %v32, 0
    %v554 = vsel %vm549, %v33, 0
    %v557 = vsel %vm549, %v34, 0
    %v560 = vsel %vm549, %v35, 0
    %562 = vmatprep.subr.mxu0 %v534
    %563 = vmatpush1.msra.mxu0 %v533
    %564 = vmatprep.subr.mxu0 %v538
    %565 = vmatpush1.msra.mxu0 %v537
    %566 = vmatprep.subr.mxu0 %v542
    %567 = vmatpush1.msra.mxu0 %v541
    %568 = vmatprep.subr.mxu0 %v546
    %569 = vmatpush1.msra.mxu0 %v545
    %570 = vmatprep.subr.mxu0 0.0
    %571 = vmatpush1.msra.mxu0 0.0
    %572 = vmatprep.subr.mxu0 0.0
    %573 = vmatpush1.msra.mxu0 0.0
    %574 = vmatprep.subr.mxu0 0.0
    %575 = vmatpush1.msra.mxu0 0.0
    %576 = vmatprep.subr.mxu0 0.0
    %577 = vmatpush1.msra.mxu0 0.0
    %578 = vmatprep.subr.mxu0 0.0
    %579 = vmatpush1.msra.mxu0 0.0
    %580 = vmatprep.subr.mxu0 0.0
    %581 = vmatpush1.msra.mxu0 0.0
    %582 = vmatprep.subr.mxu0 0.0
    %583 = vmatpush1.msra.mxu0 0.0
    %584 = vmatprep.subr.mxu0 0.0
    %585 = vmatpush1.msra.mxu0 0.0
    %586 = vmatprep.subr.mxu0 0.0
    %587 = vmatpush1.msra.mxu0 0.0
    %588 = vmatprep.subr.mxu0 0.0
    %589 = vmatpush1.msra.mxu0 0.0
    %590 = vmatprep.subr.mxu0 0.0
    %591 = vmatpush1.msra.mxu0 0.0
    %592 = vmatprep.subr.mxu0 0.0
    %593 = vmatpush1.msra.mxu0 0.0
    %594 = vmatprep.subr.mxu0 0.0
    %595 = vmatpush1.msra.mxu0 0.0
    %596 = vmatprep.subr.mxu0 0.0
    %597 = vmatpush1.msra.mxu0 0.0
    %598 = vmatprep.subr.mxu0 0.0
    %599 = vmatpush1.msra.mxu0 0.0
    %600 = vmatprep.subr.mxu0 0.0
    %601 = vmatpush1.msra.mxu0 0.0
    %602 = vmatprep.subr.mxu0 0.0
    %603 = vmatpush1.msra.mxu0 0.0
    %604 = vmatprep.subr.mxu0 0.0
    %605 = vmatpush1.msra.mxu0 0.0
    %606 = vmatprep.subr.mxu0 0.0
    %607 = vmatpush1.msra.mxu0 0.0
    %608 = vmatprep.subr.mxu0 0.0
    %609 = vmatpush1.msra.mxu0 0.0
    %610 = vmatprep.subr.mxu0 0.0
    %611 = vmatpush1.msra.mxu0 0.0
    %612 = vmatprep.subr.mxu0 0.0
    %613 = vmatpush1.msra.mxu0 0.0
    %614 = vmatprep.subr.mxu0 0.0
    %615 = vmatpush1.msra.mxu0 0.0
    %616 = vmatprep.subr.mxu0 0.0
    %617 = vmatpush1.msra.mxu0 0.0
    %618 = vmatprep.subr.mxu0 0.0
    %619 = vmatpush1.msra.mxu0 0.0
    %620 = vmatprep.subr.mxu0 0.0
    %621 = vmatpush1.msra.mxu0 0.0
    %622 = vmatprep.subr.mxu0 0.0
    %623 = vmatpush1.msra.mxu0 0.0
    %624 = vmatprep.subr.mxu0 0.0
    %625 = vmatpush1.msra.mxu0 0.0
    %626 = vmatprep.mubr.f32.mxu0 0.0
    %627 = vmatmul.mubr.f32.gmra.mrb[0].mxu0 %v551
    %v628 = vpop.f32.mrb[0].mxu0
    %v629 = vadd.f32 %v69, %v628
    %v630 = vpop.f32.mrb[0].mxu0
    %v631 = vadd.f32 %v69, %v630
    %632 = vmatprep.mubr.f32.mxu0 0.0
    %633 = vmatmul.mubr.f32.gmra.mrb[0].mxu0 %v554
    %v634 = vpop.f32.mrb[0].mxu0
    %v635 = vadd.f32 %v74, %v634
    %v636 = vpop.f32.mrb[0].mxu0
    %v637 = vadd.f32 %v74, %v636
    %638 = vmatprep.mubr.f32.mxu0 0.0
    %639 = vmatmul.mubr.f32.gmra.mrb[0].mxu0 %v557
    %v640 = vpop.f32.mrb[0].mxu0
    %v641 = vadd.f32 %v79, %v640
    %v642 = vpop.f32.mrb[0].mxu0
    %v643 = vadd.f32 %v79, %v642
    %644 = vmatprep.mubr.f32.mxu0 0.0
    %645 = vmatmul.mubr.f32.gmra.mrb[0].mxu0 %v560
    %v646 = vpop.f32.mrb[0].mxu0
    %v647 = vadd.f32 %v84, %v646
    %v648 = vpop.f32.mrb[0].mxu0
    %v649 = vadd.f32 %v84, %v648
    %650 = vdwg.mxu0
    %651 = vmatprep.subr.mxu0 %v536
    %652 = vmatpush1.msra.mxu0 %v535
    %653 = vmatprep.subr.mxu0 %v540
    %654 = vmatpush1.msra.mxu0 %v539
    %655 = vmatprep.subr.mxu0 %v544
    %656 = vmatpush1.msra.mxu0 %v543
    %657 = vmatprep.subr.mxu0 %v548
    %658 = vmatpush1.msra.mxu0 %v547
    %659 = vmatprep.subr.mxu0 0.0
    %660 = vmatpush1.msra.mxu0 0.0
    %661 = vmatprep.subr.mxu0 0.0
    %662 = vmatpush1.msra.mxu0 0.0
    %663 = vmatprep.subr.mxu0 0.0
    %664 = vmatpush1.msra.mxu0 0.0
    %665 = vmatprep.subr.mxu0 0.0
    %666 = vmatpush1.msra.mxu0 0.0
    %667 = vmatprep.subr.mxu0 0.0
    %668 = vmatpush1.msra.mxu0 0.0
    %669 = vmatprep.subr.mxu0 0.0
    %670 = vmatpush1.msra.mxu0 0.0
    %671 = vmatprep.subr.mxu0 0.0
    %672 = vmatpush1.msra.mxu0 0.0
    %673 = vmatprep.subr.mxu0 0.0
    %674 = vmatpush1.msra.mxu0 0.0
    %675 = vmatprep.subr.mxu0 0.0
    %676 = vmatpush1.msra.mxu0 0.0
    %677 = vmatprep.subr.mxu0 0.0
    %678 = vmatpush1.msra.mxu0 0.0
    %679 = vmatprep.subr.mxu0 0.0
    %680 = vmatpush1.msra.mxu0 0.0
    %681 = vmatprep.subr.mxu0 0.0
    %682 = vmatpush1.msra.mxu0 0.0
    %683 = vmatprep.subr.mxu0 0.0
    %684 = vmatpush1.msra.mxu0 0.0
    %685 = vmatprep.subr.mxu0 0.0
    %686 = vmatpush1.msra.mxu0 0.0
    %687 = vmatprep.subr.mxu0 0.0
    %688 = vmatpush1.msra.mxu0 0.0
    %689 = vmatprep.subr.mxu0 0.0
    %690 = vmatpush1.msra.mxu0 0.0
    %691 = vmatprep.subr.mxu0 0.0
    %692 = vmatpush1.msra.mxu0 0.0
    %693 = vmatprep.subr.mxu0 0.0
    %694 = vmatpush1.msra.mxu0 0.0
    %695 = vmatprep.subr.mxu0 0.0
    %696 = vmatpush1.msra.mxu0 0.0
    %697 = vmatprep.subr.mxu0 0.0
    %698 = vmatpush1.msra.mxu0 0.0
    %699 = vmatprep.subr.mxu0 0.0
    %700 = vmatpush1.msra.mxu0 0.0
    %701 = vmatprep.subr.mxu0 0.0
    %702 = vmatpush1.msra.mxu0 0.0
    %703 = vmatprep.subr.mxu0 0.0
    %704 = vmatpush1.msra.mxu0 0.0
    %705 = vmatprep.subr.mxu0 0.0
    %706 = vmatpush1.msra.mxu0 0.0
    %707 = vmatprep.subr.mxu0 0.0
    %708 = vmatpush1.msra.mxu0 0.0
    %709 = vmatprep.subr.mxu0 0.0
    %710 = vmatpush1.msra.mxu0 0.0
    %711 = vmatprep.subr.mxu0 0.0
    %712 = vmatpush1.msra.mxu0 0.0
    %713 = vmatprep.subr.mxu0 0.0
    %714 = vmatpush1.msra.mxu0 0.0
    %715 = vmatprep.mubr.f32.mxu0 0.0
    %716 = vmatmul.mubr.f32.gmra.mrb[0].mxu0 %v551
    %v717 = vpop.f32.mrb[0].mxu0
    %v718 = vadd.f32 %v69, %v717
    %v719 = vpop.f32.mrb[0].mxu0
    %v720 = vadd.f32 %v69, %v719
    %721 = vmatprep.mubr.f32.mxu0 0.0
    %722 = vmatmul.mubr.f32.gmra.mrb[0].mxu0 %v554
    %v723 = vpop.f32.mrb[0].mxu0
    %v724 = vadd.f32 %v74, %v723
    %v725 = vpop.f32.mrb[0].mxu0
    %v726 = vadd.f32 %v74, %v725
    %727 = vmatprep.mubr.f32.mxu0 0.0
    %728 = vmatmul.mubr.f32.gmra.mrb[0].mxu0 %v557
    %v729 = vpop.f32.mrb[0].mxu0
    %v730 = vadd.f32 %v79, %v729
    %v731 = vpop.f32.mrb[0].mxu0
    %v732 = vadd.f32 %v79, %v731
    %733 = vmatprep.mubr.f32.mxu0 0.0
    %734 = vmatmul.mubr.f32.gmra.mrb[0].mxu0 %v560
    %v735 = vpop.f32.mrb[0].mxu0
    %v736 = vadd.f32 %v84, %v735
    %v737 = vpop.f32.mrb[0].mxu0
    %v738 = vadd.f32 %v84, %v737
    %739 = vdwg.mxu0
    %v740 = vmax.f32 %v629, 0.0
    %v741 = vmax.f32 %v631, 0.0
    %v742 = vmax.f32 %v718, 0.0
    %v743 = vmax.f32 %v720, 0.0
    %v744 = vmax.f32 %v635, 0.0
    %v745 = vmax.f32 %v637, 0.0
    %v746 = vmax.f32 %v724, 0.0
    %v747 = vmax.f32 %v726, 0.0
    %v748 = vmax.f32 %v641, 0.0
    %v749 = vmax.f32 %v643, 0.0
    %v750 = vmax.f32 %v730, 0.0
    %v751 = vmax.f32 %v732, 0.0
    %v752 = vmax.f32 %v647, 0.0
    %v753 = vmax.f32 %v649, 0.0
    %v754 = vmax.f32 %v736, 0.0
    %v755 = vmax.f32 %v738, 0.0
    %v756 = vstv %s37
    %v758 = vsel %vm549, %v36, 0
    %760 = vmatprep.subr.mxu0 %v741
    %761 = vmatpush1.msra.mxu0 %v740
    %762 = vmatprep.subr.mxu0 %v745
    %763 = vmatpush1.msra.mxu0 %v744
    %764 = vmatprep.subr.mxu0 %v749
    %765 = vmatpush1.msra.mxu0 %v748
    %766 = vmatprep.subr.mxu0 %v753
    %767 = vmatpush1.msra.mxu0 %v752
    %768 = vmatprep.subr.mxu0 0.0
    %769 = vmatpush1.msra.mxu0 0.0
    %770 = vmatprep.subr.mxu0 0.0
    %771 = vmatpush1.msra.mxu0 0.0
    %772 = vmatprep.subr.mxu0 0.0
    %773 = vmatpush1.msra.mxu0 0.0
    %774 = vmatprep.subr.mxu0 0.0
    %775 = vmatpush1.msra.mxu0 0.0
    %776 = vmatprep.subr.mxu0 0.0
    %777 = vmatpush1.msra.mxu0 0.0
    %778 = vmatprep.subr.mxu0 0.0
    %779 = vmatpush1.msra.mxu0 0.0
    %780 = vmatprep.subr.mxu0 0.0
    %781 = vmatpush1.msra.mxu0 0.0
    %782 = vmatprep.subr.mxu0 0.0
    %783 = vmatpush1.msra.mxu0 0.0
    %784 = vmatprep.subr.mxu0 0.0
    %785 = vmatpush1.msra.mxu0 0.0
    %786 = vmatprep.subr.mxu0 0.0
    %787 = vmatpush1.msra.mxu0 0.0
    %788 = vmatprep.subr.mxu0 0.0
    %789 = vmatpush1.msra.mxu0 0.0
    %790 = vmatprep.subr.mxu0 0.0
    %791 = vmatpush1.msra.mxu0 0.0
    %792 = vmatprep.subr.mxu0 0.0
    %793 = vmatpush1.msra.mxu0 0.0
    %794 = vmatprep.subr.mxu0 0.0
    %795 = vmatpush1.msra.mxu0 0.0
    %796 = vmatprep.subr.mxu0 0.0
    %797 = vmatpush1.msra.mxu0 0.0
    %798 = vmatprep.subr.mxu0 0.0
    %799 = vmatpush1.msra.mxu0 0.0
    %800 = vmatprep.subr.mxu0 0.0
    %801 = vmatpush1.msra.mxu0 0.0
    %802 = vmatprep.subr.mxu0 0.0
    %803 = vmatpush1.msra.mxu0 0.0
    %804 = vmatprep.subr.mxu0 0.0
    %805 = vmatpush1.msra.mxu0 0.0
    %806 = vmatprep.subr.mxu0 0.0
    %807 = vmatpush1.msra.mxu0 0.0
    %808 = vmatprep.subr.mxu0 0.0
    %809 = vmatpush1.msra.mxu0 0.0
    %810 = vmatprep.subr.mxu0 0.0
    %811 = vmatpush1.msra.mxu0 0.0
    %812 = vmatprep.subr.mxu0 0.0
    %813 = vmatpush1.msra.mxu0 0.0
    %814 = vmatprep.subr.mxu0 0.0
    %815 = vmatpush1.msra.mxu0 0.0
    %816 = vmatprep.subr.mxu0 0.0
    %817 = vmatpush1.msra.mxu0 0.0
    %818 = vmatprep.subr.mxu0 0.0
    %819 = vmatpush1.msra.mxu0 0.0
    %820 = vmatprep.subr.mxu0 0.0
    %821 = vmatpush1.msra.mxu0 0.0
    %822 = vmatprep.subr.mxu0 0.0
    %823 = vmatpush1.msra.mxu0 0.0
    %824 = vmatprep.mubr.f32.mxu0 0.0
    %825 = vmatmul.mubr.f32.gmra.mrb[0].mxu0 %v758
    %v826 = vpop.f32.mrb[0].mxu0
    %v827 = vadd.f32 %v756, %v826
    %v828 = vpop.f32.mrb[0].mxu0
    %v829 = vadd.f32 %v756, %v828
    %830 = vdwg.mxu0
    %831 = vmatprep.subr.mxu0 %v743
    %832 = vmatpush1.msra.mxu0 %v742
    %833 = vmatprep.subr.mxu0 %v747
    %834 = vmatpush1.msra.mxu0 %v746
    %835 = vmatprep.subr.mxu0 %v751
    %836 = vmatpush1.msra.mxu0 %v750
    %837 = vmatprep.subr.mxu0 %v755
    %838 = vmatpush1.msra.mxu0 %v754
    %839 = vmatprep.subr.mxu0 0.0
    %840 = vmatpush1.msra.mxu0 0.0
    %841 = vmatprep.subr.mxu0 0.0
    %842 = vmatpush1.msra.mxu0 0.0
    %843 = vmatprep.subr.mxu0 0.0
    %844 = vmatpush1.msra.mxu0 0.0
    %845 = vmatprep.subr.mxu0 0.0
    %846 = vmatpush1.msra.mxu0 0.0
    %847 = vmatprep.subr.mxu0 0.0
    %848 = vmatpush1.msra.mxu0 0.0
    %849 = vmatprep.subr.mxu0 0.0
    %850 = vmatpush1.msra.mxu0 0.0
    %851 = vmatprep.subr.mxu0 0.0
    %852 = vmatpush1.msra.mxu0 0.0
    %853 = vmatprep.subr.mxu0 0.0
    %854 = vmatpush1.msra.mxu0 0.0
    %855 = vmatprep.subr.mxu0 0.0
    %856 = vmatpush1.msra.mxu0 0.0
    %857 = vmatprep.subr.mxu0 0.0
    %858 = vmatpush1.msra.mxu0 0.0
    %859 = vmatprep.subr.mxu0 0.0
    %860 = vmatpush1.msra.mxu0 0.0
    %861 = vmatprep.subr.mxu0 0.0
    %862 = vmatpush1.msra.mxu0 0.0
    %863 = vmatprep.subr.mxu0 0.0
    %864 = vmatpush1.msra.mxu0 0.0
    %865 = vmatprep.subr.mxu0 0.0
    %866 = vmatpush1.msra.mxu0 0.0
    %867 = vmatprep.subr.mxu0 0.0
    %868 = vmatpush1.msra.mxu0 0.0
    %869 = vmatprep.subr.mxu0 0.0
    %870 = vmatpush1.msra.mxu0 0.0
    %871 = vmatprep.subr.mxu0 0.0
    %872 = vmatpush1.msra.mxu0 0.0
    %873 = vmatprep.subr.mxu0 0.0
    %874 = vmatpush1.msra.mxu0 0.0
    %875 = vmatprep.subr.mxu0 0.0
    %876 = vmatpush1.msra.mxu0 0.0
    %877 = vmatprep.subr.mxu0 0.0
    %878 = vmatpush1.msra.mxu0 0.0
    %879 = vmatprep.subr.mxu0 0.0
    %880 = vmatpush1.msra.mxu0 0.0
    %881 = vmatprep.subr.mxu0 0.0
    %882 = vmatpush1.msra.mxu0 0.0
    %883 = vmatprep.subr.mxu0 0.0
    %884 = vmatpush1.msra.mxu0 0.0
    %885 = vmatprep.subr.mxu0 0.0
    %886 = vmatpush1.msra.mxu0 0.0
    %887 = vmatprep.subr.mxu0 0.0
    %888 = vmatpush1.msra.mxu0 0.0
    %889 = vmatprep.subr.mxu0 0.0
    %890 = vmatpush1.msra.mxu0 0.0
    %891 = vmatprep.subr.mxu0 0.0
    %892 = vmatpush1.msra.mxu0 0.0
    %893 = vmatprep.subr.mxu0 0.0
    %894 = vmatpush1.msra.mxu0 0.0
    %895 = vmatprep.mubr.f32.mxu0 0.0
    %896 = vmatmul.mubr.f32.gmra.mrb[0].mxu0 %v758
    %v897 = vpop.f32.mrb[0].mxu0
    %v898 = vadd.f32 %v756, %v897
    %v899 = vpop.f32.mrb[0].mxu0
    %v900 = vadd.f32 %v756, %v899
    %901 = vdwg.mxu0
    %v906 = vcombine.low %v827, %v829
    %v907 = vcombine.low %v898, %v900
    %v909 = vunpack.c.l.s4 1966171168
    %v910 = vunpack.c.0.s8 %v909
    %v911 = vlaneseq
    %v912 = vshrl.u32 %v911, 7
    %v913 = vsub.s32 %v910, %v912
    %v914 = vrot.slane %v906, %v913
    %v916 = vunpack.c.l.s4 1966171168
    %v917 = vunpack.c.0.s8 %v916
    %v918 = vlaneseq
    %v919 = vshrl.u32 %v918, 7
    %v920 = vsub.s32 %v917, %v919
    %v921 = vrot.slane %v907, %v920
    %v922 = vcombine.low %v914, %v921
    %v924 = vunpack.c.l.s4 1966171168
    %v925 = vunpack.c.0.s8 %v924
    %v926 = vlaneseq
    %v927 = vshrl.u32 %v926, 7
    %v928 = vsub.s32 %v925, %v927
    %v929 = vrot.slane %v922, %v928
    %v931 = vlaneseq
    %vm932 = vcmp.ge.s32.totalorder %v931, 0
    %vm933 = vcmp.lt.s32.totalorder %v931, 512
    %vm934 = vmand %vm932, %vm933
    %935 = vst.msk [vmem:[#allocation3] sm:$0xf] %vm934, %v929
    // Predicated region
    $region30: #{tpu_custom_call.1} parent=1 // pred_check
      _
    $region31: #{tpu_custom_call.1} parent=1 // pred_check_branch
      %937 = sbr.rel (0) target = $region33
    $region32: #{tpu_custom_call.1} parent=1 // pred_region
      %s939 = ssub.s32 64, 16
      %940 = vsyncadd [#allocation4], %s939
      %s942 = sshll.u32 [#allocation3], 4
      %s943 = int_to_ptr.vmem [resolvable:$true] %s942
      %945 = dma.vmem_to_hbm [thread:$0]  %s943, 16, %s7, [#allocation4]
    $region33: #{tpu_custom_call.1} parent=1 // pred_fallthru
      _
    // Predicated region
    $region34: #{tpu_custom_call.1} parent=1 // pred_check
      _
    $region35: #{tpu_custom_call.1} parent=1 // pred_check_branch
      %947 = sbr.rel (0) target = $region37
    $region36: #{tpu_custom_call.1} parent=1 // pred_region
      %948 = dma.done [#allocation4], 64
    $region37: #{tpu_custom_call.1} parent=1 // pred_fallthru
      _
    %949 = vsyncpa [#allocation4], 1

</llo_original>
